<compile_context>
chip_gen: v6e
topology: v6e:2x2x1
jax: 0.10.0
libtpu: 0.0.40
codegen_flags: <defaults>
</compile_context>

<pallas_src>
import jax
import jax.numpy as jnp
from jax.experimental import pallas as pl
from jax.experimental.pallas import tpu as pltpu


_LANE = 128
_MXU_MIN_CIN = 64                       # below this, VPU FMA beats the padded MXU matmul
_VMEM_DATA_BUDGET = 12 * 1024 * 1024    # double-buffered x+out bytes per grid step
_VMEM_LIMIT_BYTES = 40 * 1024 * 1024    # > v5e 16MiB default scoped, < v7x 64MiB physical


def _mxu_kernel(w_ref, x_ref, o_ref):
    # w_ref: VMEM (C_out, C_in); x_ref: VMEM (1, C_in, T); o_ref: VMEM (1, C_out, T)
    acc = jnp.dot(w_ref[...], x_ref[0], preferred_element_type=jnp.float32)
    o_ref[0] = acc.astype(o_ref.dtype)


def _vpu_kernel(w_ref, x_ref, o_ref):
    # w_ref: SMEM (C_out, C_in) f32 scalars; x_ref: VMEM (1, C_in, T);
    # o_ref: VMEM (1, C_out, T).  Fully unrolled FMAs; avoids MXU padding waste
    # and the result-FIFO round trip for tiny channel counts.
    c_out, c_in = w_ref.shape
    x = x_ref[0].astype(jnp.float32)                      # (C_in, T)
    rows = []
    for o in range(c_out):
        acc = w_ref[o, 0] * x[0:1, :]
        for c in range(1, c_in):
            acc = acc + w_ref[o, c] * x[c:c + 1, :]
        rows.append(acc)
    o_ref[0] = jnp.concatenate(rows, axis=0).astype(o_ref.dtype)


def _spatial_tile(length, c_in, c_out, itemsize):
    """Pick a lane-dense spatial tile (multiple of 128) bounded by VMEM budget."""
    per_lane = 2 * (c_in + c_out) * itemsize              # 2x for double buffering
    t_max = max(_LANE, (_VMEM_DATA_BUDGET // per_lane) // _LANE * _LANE)
    t = min(2048, t_max)
    l_pad = -(-length // _LANE) * _LANE
    if l_pad <= t:
        return l_pad, l_pad                               # single tile covers it
    l_pad = -(-length // t) * t                           # pad so grid divides evenly
    return t, l_pad


def reduce_channel(x, weight, *, use_bf16=False):
    """1x1 conv, no bias.  x: (N, C_in, H, W); weight: (C_out, C_in, 1, 1)."""
    N, C_in, H, W = x.shape
    C_out = weight.shape[0]
    HW = H * W
    out_dtype = x.dtype
    compute_dtype = jnp.bfloat16 if use_bf16 else x.dtype

    w2d = weight.reshape(C_out, C_in)

    # Fold batch into the spatial (lane) axis when per-batch H*W is small:
    # amortizes the fixed per-grid-step overhead and lengthens the lane dim.
    fold_batch = (HW < 4 * _LANE) and (N > 1)
    if fold_batch:
        x3 = jnp.transpose(x.reshape(N, C_in, HW), (1, 0, 2)).reshape(1, C_in, N * HW)
        NB, L = 1, N * HW
    else:
        x3 = x.reshape(N, C_in, HW)
        NB, L = N, HW

    T, L_pad = _spatial_tile(L, C_in, C_out, jnp.dtype(compute_dtype).itemsize)
    if L_pad != L:
        x3 = jnp.pad(x3, ((0, 0), (0, 0), (0, L_pad - L)))   # zero pad -> zero out, sliced off
    x3 = x3.astype(compute_dtype)

    if C_in >= _MXU_MIN_CIN:
        kernel = _mxu_kernel
        w_arg = w2d.astype(compute_dtype)
        w_spec = pl.BlockSpec((C_out, C_in), lambda n, s: (0, 0))      # constant VMEM tile
    else:
        kernel = _vpu_kernel
        w_arg = w2d.astype(jnp.float32)                                # SMEM scalars
        w_spec = pl.BlockSpec(memory_space=pltpu.MemorySpace.SMEM)

    grid = (NB, L_pad // T)

    out3 = pl.pallas_call(
        kernel,
        out_shape=jax.ShapeDtypeStruct((NB, C_out, L_pad), out_dtype),
        grid_spec=pltpu.PrefetchScalarGridSpec(
            num_scalar_prefetch=0,
            grid=grid,
            in_specs=[
                w_spec,
                # NOTE: if profiling shows exposed DMA after tiling, add
                # pipeline_mode=pl.Buffered(3) here (skip on v7x if VMEM is tight).
                pl.BlockSpec((1, C_in, T), lambda n, s: (n, 0, s)),
            ],
            out_specs=pl.BlockSpec((1, C_out, T), lambda n, s: (n, 0, s)),
        ),
        compiler_params=pltpu.CompilerParams(
            dimension_semantics=("parallel", "parallel"),
            vmem_limit_bytes=_VMEM_LIMIT_BYTES,
        ),
    )(w_arg, x3)

    out3 = out3[:, :, :L]
    if fold_batch:
        out = jnp.transpose(out3.reshape(C_out, N, HW), (1, 0, 2))
    else:
        out = out3
    return out.reshape(N, C_out, H, W)


if __name__ == "__main__":
    key = jax.random.PRNGKey(0)
    k_x, k_w, k_x2, k_w2 = jax.random.split(key, 4)

    # Primary check: small shapes implied by the module (n_feat=4).
    # Exercises the VPU path + batch folding.
    N, C, Hs, Ws = 2, 4, 16, 16
    x = jax.random.normal(k_x, (N, C, Hs, Ws), dtype=jnp.float32)
    weight = jax.random.normal(k_w, (C // 2, C, 1, 1), dtype=jnp.float32) * 0.1

    out = reduce_channel(x, weight)
    jax.block_until_ready(out)

    ref = jnp.einsum("oc,nchw->nohw", weight.reshape(C // 2, C), x)
    assert out.shape == (N, C // 2, Hs, Ws)
    assert jnp.allclose(out, ref, atol=1e-5, rtol=1e-5)

    # Secondary check: larger channel count -> MXU path, spatial tiling + padding.
    N2, C2, H2, W2 = 2, 64, 24, 24
    x2 = jax.random.normal(k_x2, (N2, C2, H2, W2), dtype=jnp.float32)
    weight2 = jax.random.normal(k_w2, (C2 // 2, C2, 1, 1), dtype=jnp.float32) * 0.05

    out2 = reduce_channel(x2, weight2)
    jax.block_until_ready(out2)

    ref2 = jnp.einsum("oc,nchw->nohw", weight2.reshape(C2 // 2, C2), x2)
    assert out2.shape == (N2, C2 // 2, H2, W2)
    assert jnp.allclose(out2, ref2, atol=1e-4, rtol=1e-4)

    print("KERNEL_OK")
</pallas_src>

<mosaic_0001>
module attributes {stable_mosaic.version = 11 : i64} {
  func.func @_vpu_kernel(%arg0: i32, %arg1: i32, %arg2: memref<2x4xf32, #tpu.memory_space<smem>>, %arg3: memref<1x4x512xf32, #tpu.memory_space<vmem>>, %arg4: memref<1x2x512xf32, #tpu.memory_space<vmem>>) attributes {dimension_semantics = [#tpu.dimension_semantics<parallel>, #tpu.dimension_semantics<parallel>], iteration_bounds = array<i64: 1, 1>, scalar_prefetch = 0 : i64, scratch_operands = 0 : i64, tpu.core_type = #tpu.core_type<tc>, window_params = [{transform_indices = @transform_0, window_bounds = array<i64: 2, 4>}, {transform_indices = @transform_1, window_bounds = array<i64: 1, 4, 512>}, {transform_indices = @transform_2, window_bounds = array<i64: 1, 2, 512>}]} {
    %c0 = arith.constant 0 : index
    %c0_0 = arith.constant 0 : index
    %c0_1 = arith.constant 0 : index
    %0 = vector.load %arg3[%c0, %c0_0, %c0_1] : memref<1x4x512xf32, #tpu.memory_space<vmem>>, vector<1x4x512xf32>
    %1 = vector.shape_cast %0 : vector<1x4x512xf32> to vector<4x512xf32>
    %c0_2 = arith.constant 0 : index
    %c0_3 = arith.constant 0 : index
    %2 = memref.load %arg2[%c0_2, %c0_3] : memref<2x4xf32, #tpu.memory_space<smem>>
    %3 = vector.extract_strided_slice %1 {offsets = [0, 0], sizes = [1, 512], strides = [1, 1]} : vector<4x512xf32> to vector<1x512xf32>
    %4 = vector.broadcast %2 : f32 to vector<1x512xf32>
    %5 = arith.mulf %4, %3 : vector<1x512xf32>
    %c0_4 = arith.constant 0 : index
    %c1 = arith.constant 1 : index
    %6 = memref.load %arg2[%c0_4, %c1] : memref<2x4xf32, #tpu.memory_space<smem>>
    %7 = vector.extract_strided_slice %1 {offsets = [1, 0], sizes = [1, 512], strides = [1, 1]} : vector<4x512xf32> to vector<1x512xf32>
    %8 = vector.broadcast %6 : f32 to vector<1x512xf32>
    %9 = arith.mulf %8, %7 : vector<1x512xf32>
    %10 = arith.addf %5, %9 : vector<1x512xf32>
    %c0_5 = arith.constant 0 : index
    %c2 = arith.constant 2 : index
    %11 = memref.load %arg2[%c0_5, %c2] : memref<2x4xf32, #tpu.memory_space<smem>>
    %12 = vector.extract_strided_slice %1 {offsets = [2, 0], sizes = [1, 512], strides = [1, 1]} : vector<4x512xf32> to vector<1x512xf32>
    %13 = vector.broadcast %11 : f32 to vector<1x512xf32>
    %14 = arith.mulf %13, %12 : vector<1x512xf32>
    %15 = arith.addf %10, %14 : vector<1x512xf32>
    %c0_6 = arith.constant 0 : index
    %c3 = arith.constant 3 : index
    %16 = memref.load %arg2[%c0_6, %c3] : memref<2x4xf32, #tpu.memory_space<smem>>
    %17 = vector.extract_strided_slice %1 {offsets = [3, 0], sizes = [1, 512], strides = [1, 1]} : vector<4x512xf32> to vector<1x512xf32>
    %18 = vector.broadcast %16 : f32 to vector<1x512xf32>
    %19 = arith.mulf %18, %17 : vector<1x512xf32>
    %20 = arith.addf %15, %19 : vector<1x512xf32>
    %c1_7 = arith.constant 1 : index
    %c0_8 = arith.constant 0 : index
    %21 = memref.load %arg2[%c1_7, %c0_8] : memref<2x4xf32, #tpu.memory_space<smem>>
    %22 = vector.extract_strided_slice %1 {offsets = [0, 0], sizes = [1, 512], strides = [1, 1]} : vector<4x512xf32> to vector<1x512xf32>
    %23 = vector.broadcast %21 : f32 to vector<1x512xf32>
    %24 = arith.mulf %23, %22 : vector<1x512xf32>
    %c1_9 = arith.constant 1 : index
    %c1_10 = arith.constant 1 : index
    %25 = memref.load %arg2[%c1_9, %c1_10] : memref<2x4xf32, #tpu.memory_space<smem>>
    %26 = vector.extract_strided_slice %1 {offsets = [1, 0], sizes = [1, 512], strides = [1, 1]} : vector<4x512xf32> to vector<1x512xf32>
    %27 = vector.broadcast %25 : f32 to vector<1x512xf32>
    %28 = arith.mulf %27, %26 : vector<1x512xf32>
    %29 = arith.addf %24, %28 : vector<1x512xf32>
    %c1_11 = arith.constant 1 : index
    %c2_12 = arith.constant 2 : index
    %30 = memref.load %arg2[%c1_11, %c2_12] : memref<2x4xf32, #tpu.memory_space<smem>>
    %31 = vector.extract_strided_slice %1 {offsets = [2, 0], sizes = [1, 512], strides = [1, 1]} : vector<4x512xf32> to vector<1x512xf32>
    %32 = vector.broadcast %30 : f32 to vector<1x512xf32>
    %33 = arith.mulf %32, %31 : vector<1x512xf32>
    %34 = arith.addf %29, %33 : vector<1x512xf32>
    %c1_13 = arith.constant 1 : index
    %c3_14 = arith.constant 3 : index
    %35 = memref.load %arg2[%c1_13, %c3_14] : memref<2x4xf32, #tpu.memory_space<smem>>
    %36 = vector.extract_strided_slice %1 {offsets = [3, 0], sizes = [1, 512], strides = [1, 1]} : vector<4x512xf32> to vector<1x512xf32>
    %37 = vector.broadcast %35 : f32 to vector<1x512xf32>
    %38 = arith.mulf %37, %36 : vector<1x512xf32>
    %39 = arith.addf %34, %38 : vector<1x512xf32>
    %40 = tpu.concatenate %20, %39 in 0 : vector<1x512xf32>, vector<1x512xf32> -> vector<2x512xf32>
    %c0_15 = arith.constant 0 : index
    %c0_16 = arith.constant 0 : index
    %c0_17 = arith.constant 0 : index
    %41 = vector.load %arg4[%c0_15, %c0_16, %c0_17] : memref<1x2x512xf32, #tpu.memory_space<vmem>>, vector<1x2x512xf32>
    %42 = vector.shape_cast %41 : vector<1x2x512xf32> to vector<2x512xf32>
    %43 = vector.shape_cast %40 : vector<2x512xf32> to vector<1x2x512xf32>
    tpu.vector_store %arg4[%c0_15, %c0_16, %c0_17], %43 {strides = array<i32>} : memref<1x2x512xf32, #tpu.memory_space<vmem>>, vector<1x2x512xf32>,
    return
  }
  func.func @transform_0(%arg0: i32, %arg1: i32) -> (i32, i32) {
    %c0_i32 = arith.constant 0 : i32
    %c0_i32_0 = arith.constant 0 : i32
    %c0_i32_1 = arith.constant 0 : i32
    return %c0_i32, %c0_i32_0 : i32, i32
  }
  func.func @transform_1(%arg0: i32, %arg1: i32) -> (i32, i32, i32) {
    %c0_i32 = arith.constant 0 : i32
    %c0_i32_0 = arith.constant 0 : i32
    return %arg0, %c0_i32, %arg1 : i32, i32, i32
  }
  func.func @transform_2(%arg0: i32, %arg1: i32) -> (i32, i32, i32) {
    %c0_i32 = arith.constant 0 : i32
    %c0_i32_0 = arith.constant 0 : i32
    return %arg0, %c0_i32, %arg1 : i32, i32, i32
  }
}

</mosaic_0001>

<llo_original>
// kernel: tpu_custom_call.1
$region0: #{tpu_custom_call.1}
  #allocation0 [shape = 'u32[]', space=smem, size = 0x4, offset = 0x4, fixed_abs, tag = 'smem constant byte address 0x4 - core index']
  #allocation1 [shape = 'u32[144,128]{1,0:T(1,128)}', space=vmem, size = 0x12000, scoped, tag = 'internal scratch']
  %s0 = inlined_call_operand.hbm [shape: f32[2,4], index: 0, kind: input, shape index: {}]
  %s1 = inlined_call_operand.hbm [shape: f32[1,4,512], index: 1, kind: input, shape index: {}]
  %s2 = inlined_call_operand.hbm [shape: f32[1,2,512], index: 2, kind: output, shape index: {}]
  %s3 = sld [smem:[#allocation0]]
  $region26: #{tpu_custom_call.1} parent=0
    _
  %s5 = ssub.s32 1, %s3
  %s6 = scalar_select 0, %s5, %s3
  $region1: #{tpu_custom_call.1} parent=0
    #allocation2 [shape = 'u8[1024]{0}', space=smem, size = 0x400, scoped, tag = 'input window, operand 0, single buffered']
    #allocation3 [shape = 's32[1]{0}', space=sflag, size = 0x4, scoped, tag = 'scoped memory for tpu_custom_call.1']
    #allocation4 [shape = 's32[1]{0}', space=sflag, size = 0x4, scoped, tag = 'scoped memory for tpu_custom_call.1']
    #allocation5 [shape = 's32[1]{0}', space=sflag, size = 0x4, scoped, tag = 'scoped memory for tpu_custom_call.1']
    #allocation6 [shape = 'u8[8192]{0}', space=vmem, size = 0x2000, scoped, tag = 'input window, operand 1, single buffered']
    #allocation7 [shape = 'u8[4096]{0}', space=vmem, size = 0x1000, scoped, tag = 'output window, operand 0, single buffered']
    %7 = vsyncpa [#allocation5], 0
    %8 = vsyncpa [#allocation3], 0
    %9 = vsyncpa [#allocation4], 0
    // Predicated region
    $region2: #{tpu_custom_call.1} parent=1 // pred_check
      _
    $region3: #{tpu_custom_call.1} parent=1 // pred_check_branch
      %11 = sbr.rel (0) target = $region5
    $region4: #{tpu_custom_call.1} parent=1 // pred_region
      %s13 = ssub.s32 32, 32
      %14 = vsyncadd [#allocation5], %s13
      %17 = dma.hbm_to_smem %s0, 32, [#allocation2], [#allocation5]
    $region5: #{tpu_custom_call.1} parent=1 // pred_fallthru
      _
    // Predicated region
    $region6: #{tpu_custom_call.1} parent=1 // pred_check
      _
    $region7: #{tpu_custom_call.1} parent=1 // pred_check_branch
      %19 = sbr.rel (0) target = $region9
    $region8: #{tpu_custom_call.1} parent=1 // pred_region
      %s21 = ssub.s32 256, 256
      %22 = vsyncadd [#allocation3], %s21
      %s24 = sshll.u32 [#allocation6], 4
      %s25 = int_to_ptr.vmem [resolvable:$true] %s24
      %27 = dma.hbm_to_vmem [thread:$0]  %s1, 256, %s25, [#allocation3]
    $region9: #{tpu_custom_call.1} parent=1 // pred_fallthru
      _
    // Predicated region
    $region10: #{tpu_custom_call.1} parent=1 // pred_check
      _
    $region11: #{tpu_custom_call.1} parent=1 // pred_check_branch
      %29 = sbr.rel (0) target = $region13
    $region12: #{tpu_custom_call.1} parent=1 // pred_region
      %30 = dma.done [#allocation5], 32
    $region13: #{tpu_custom_call.1} parent=1 // pred_fallthru
      _
    // Predicated region
    $region14: #{tpu_custom_call.1} parent=1 // pred_check
      _
    $region15: #{tpu_custom_call.1} parent=1 // pred_check_branch
      %32 = sbr.rel (0) target = $region17
    $region16: #{tpu_custom_call.1} parent=1 // pred_region
      %33 = dma.done [#allocation3], 256
    $region17: #{tpu_custom_call.1} parent=1 // pred_fallthru
      _
    %34 = sfence
    %v35 = vld [vmem:[#allocation6] sm:$0xff]
    %v36 = vld [vmem:[#allocation6 + $0x8] sm:$0xff]
    %s37 = sld [smem:[#allocation2]]
    %v38 = vstv %s37
    %v39 = vmul.f32 %v38, %v35
    %v40 = vmul.f32 %v38, %v36
    %s41 = sld [smem:[#allocation2 + $0x1]]
    %v42 = vstv %s41
    %v43 = vmul.f32 %v42, %v35
    %v44 = vmul.f32 %v42, %v36
    %v47 = vrot.slane %v43, 5
    %v48 = vrot.slane %v47, 4
    %v49 = vrot.slane %v44, 5
    %v50 = vrot.slane %v49, 4
    %v53 = vadd.f32 %v39, %v48
    %v54 = vadd.f32 %v40, %v50
    %s55 = sld [smem:[#allocation2 + $0x2]]
    %v56 = vstv %s55
    %v57 = vmul.f32 %v56, %v35
    %v58 = vmul.f32 %v56, %v36
    %v61 = vrot.slane %v57, 6
    %v62 = vrot.slane %v61, 4
    %v63 = vrot.slane %v58, 6
    %v64 = vrot.slane %v63, 4
    %v67 = vadd.f32 %v53, %v62
    %v68 = vadd.f32 %v54, %v64
    %s69 = sld [smem:[#allocation2 + $0x3]]
    %v70 = vstv %s69
    %v71 = vmul.f32 %v70, %v35
    %v72 = vmul.f32 %v70, %v36
    %v75 = vrot.slane %v71, 7
    %v76 = vrot.slane %v75, 4
    %v77 = vrot.slane %v72, 7
    %v78 = vrot.slane %v77, 4
    %v81 = vadd.f32 %v67, %v76
    %v82 = vadd.f32 %v68, %v78
    %s83 = sld [smem:[#allocation2 + $0x80]]
    %v84 = vstv %s83
    %v85 = vmul.f32 %v84, %v35
    %v86 = vmul.f32 %v84, %v36
    %s87 = sld [smem:[#allocation2 + $0x81]]
    %v88 = vstv %s87
    %v89 = vmul.f32 %v88, %v35
    %v90 = vmul.f32 %v88, %v36
    %v93 = vrot.slane %v89, 5
    %v94 = vrot.slane %v93, 4
    %v95 = vrot.slane %v90, 5
    %v96 = vrot.slane %v95, 4
    %v99 = vadd.f32 %v85, %v94
    %v100 = vadd.f32 %v86, %v96
    %s101 = sld [smem:[#allocation2 + $0x82]]
    %v102 = vstv %s101
    %v103 = vmul.f32 %v102, %v35
    %v104 = vmul.f32 %v102, %v36
    %v107 = vrot.slane %v103, 6
    %v108 = vrot.slane %v107, 4
    %v109 = vrot.slane %v104, 6
    %v110 = vrot.slane %v109, 4
    %v113 = vadd.f32 %v99, %v108
    %v114 = vadd.f32 %v100, %v110
    %s115 = sld [smem:[#allocation2 + $0x83]]
    %v116 = vstv %s115
    %v117 = vmul.f32 %v116, %v35
    %v118 = vmul.f32 %v116, %v36
    %v121 = vrot.slane %v117, 7
    %v122 = vrot.slane %v121, 4
    %v123 = vrot.slane %v118, 7
    %v124 = vrot.slane %v123, 4
    %v127 = vadd.f32 %v113, %v122
    %v128 = vadd.f32 %v114, %v124
    %v131 = vlaneseq
    %v132 = vshrl.u32 %v131, 7
    %v133 = vsub.s32 0, %v132
    %v134 = vrot.slane %v81, %v133
    %v135 = vlaneseq
    %v136 = vshrl.u32 %v135, 7
    %v137 = vsub.s32 4, %v136
    %v138 = vrot.slane %v81, %v137
    %v139 = vlaneseq
    %v140 = vshrl.u32 %v139, 7
    %v141 = vsub.s32 0, %v140
    %v142 = vrot.slane %v82, %v141
    %v143 = vlaneseq
    %v144 = vshrl.u32 %v143, 7
    %v145 = vsub.s32 4, %v144
    %v146 = vrot.slane %v82, %v145
    %v153 = vlaneseq
    %v154 = vshrl.u32 %v153, 7
    %v155 = vsub.s32 0, %v154
    %v156 = vrot.slane %v127, %v155
    %v157 = vlaneseq
    %v158 = vshrl.u32 %v157, 7
    %v159 = vsub.s32 4, %v158
    %v160 = vrot.slane %v127, %v159
    %v161 = vlaneseq
    %v162 = vshrl.u32 %v161, 7
    %v163 = vsub.s32 0, %v162
    %v164 = vrot.slane %v128, %v163
    %v165 = vlaneseq
    %v166 = vshrl.u32 %v165, 7
    %v167 = vsub.s32 4, %v166
    %v168 = vrot.slane %v128, %v167
    %vm173 = vcmask 1040384
    %v174 = vsel %vm173, %v134, %v156
    %v175 = vsel %vm173, %v138, %v160
    %v176 = vsel %vm173, %v142, %v164
    %v177 = vsel %vm173, %v146, %v168
    %v182 = vcombine.low %v174, %v175
    %v183 = vcombine.low %v176, %v177
    %v185 = vunpack.c.l.s4 1983009808
    %v186 = vunpack.c.0.s8 %v185
    %v187 = vlaneseq
    %v188 = vshrl.u32 %v187, 7
    %v189 = vsub.s32 %v186, %v188
    %v190 = vrot.slane %v182, %v189
    %v192 = vunpack.c.l.s4 1983009808
    %v193 = vunpack.c.0.s8 %v192
    %v194 = vlaneseq
    %v195 = vshrl.u32 %v194, 7
    %v196 = vsub.s32 %v193, %v195
    %v197 = vrot.slane %v183, %v196
    %v198 = vcombine.low %v190, %v197
    %200 = vst [vmem:[#allocation7] sm:$0xff] %v198
    // Predicated region
    $region18: #{tpu_custom_call.1} parent=1 // pred_check
      _
    $region19: #{tpu_custom_call.1} parent=1 // pred_check_branch
      %202 = sbr.rel (0) target = $region21
    $region20: #{tpu_custom_call.1} parent=1 // pred_region
      %s204 = ssub.s32 128, 128
      %205 = vsyncadd [#allocation4], %s204
      %s207 = sshll.u32 [#allocation7], 4
      %s208 = int_to_ptr.vmem [resolvable:$true] %s207
      %210 = dma.vmem_to_hbm [thread:$0]  %s208, 128, %s2, [#allocation4]
    $region21: #{tpu_custom_call.1} parent=1 // pred_fallthru
      _
    // Predicated region
    $region22: #{tpu_custom_call.1} parent=1 // pred_check
      _
    $region23: #{tpu_custom_call.1} parent=1 // pred_check_branch
      %212 = sbr.rel (0) target = $region25
    $region24: #{tpu_custom_call.1} parent=1 // pred_region
      %213 = dma.done [#allocation4], 128
    $region25: #{tpu_custom_call.1} parent=1 // pred_fallthru
      _
    %214 = vsyncpa [#allocation3], 1
    %215 = vsyncpa [#allocation4], 1
    %216 = vsyncpa [#allocation5], 1

</llo_original>
